<compile_context>
chip_gen: v5e
topology: v5e:2x2
jax: 0.10.0
libtpu: 0.0.40
codegen_flags: <defaults>
</compile_context>

<pallas_src>
import jax
import jax.numpy as jnp
from jax.experimental import pallas as pl
from jax.experimental.pallas import tpu as pltpu

_LANES = 128            # lane width of the output slab
_MAX_BLOCK_ROWS = 8192  # 8192 x 128 f32 = 4 MiB/buffer (8 MiB double-buffered)


def _round_up(v: int, m: int) -> int:
    return ((v + m - 1) // m) * m


def _fill_kernel(s_ref, o_ref):
    # s_ref: scalar-prefetched SMEM ref, shape (1,) -- precomputed exp(10*variance)
    # o_ref: VMEM output tile, shape (block_rows, 128) -- lane-dense, unmasked vst
    o_ref[...] = jnp.full(o_ref.shape, s_ref[0], dtype=o_ref.dtype)


def single_variance_forward(x: jax.Array, variance: jax.Array) -> jax.Array:
    """Pallas equivalent of SingleVarianceNetwork.forward.

    Args:
      x: any array whose leading dim is the batch size N (only len(x) is used).
      variance: scalar parameter (shape (), (1,) or (1,1) accepted).
    Returns:
      (N, 1) float32 array filled with exp(10 * variance).
    """
    n = int(x.shape[0])
    if n == 0:
        return jnp.zeros((0, 1), jnp.float32)

    # Robust to nn.Parameter stored as (), (1,) or (1,1); one exp per call.
    v = jnp.asarray(variance, jnp.float32).reshape(-1)[:1]
    s = jnp.exp(v * 10.0)  # shape (1,), hoisted scalar transcendental

    # Lane-dense slab geometry: rows x 128 f32, tiled over rows.
    rows = pl.cdiv(n, _LANES)
    if rows <= 8:
        # Single full block (block dim == full array dim is always legal).
        block_rows = rows
    else:
        # At least 2 tiles (feeds both v7x TensorCores), capped at 4 MiB/buffer
        # so the double-buffered output stays within v5e's 16 MiB scoped VMEM.
        block_rows = min(_MAX_BLOCK_ROWS, _round_up(pl.cdiv(rows, 2), 8))
    grid = (pl.cdiv(rows, block_rows),)

    slab = pl.pallas_call(
        _fill_kernel,
        out_shape=jax.ShapeDtypeStruct((rows, _LANES), jnp.float32),
        grid_spec=pltpu.PrefetchScalarGridSpec(
            num_scalar_prefetch=1,           # s lands in SMEM before the grid runs
            grid=grid,
            in_specs=[],                     # no tiled inputs
            out_specs=pl.BlockSpec((block_rows, _LANES),
                                   lambda i, s_ref: (i, 0)),
        ),
        compiler_params=pltpu.CompilerParams(
            dimension_semantics=("parallel",)),
    )(s)

    if n % _LANES == 0:
        # Row-major contiguous: pure metadata reshape, no extra HBM pass.
        return slab.reshape(n, 1)
    # Non-lane-aligned N: pay the tail slice (single small copy).
    return slab.reshape(-1)[:n].reshape(n, 1)


def single_variance_ref(x, variance):
    # Pure-JAX reference mirroring the PyTorch forward.
    return jnp.ones((x.shape[0], 1), jnp.float32) * jnp.exp(
        jnp.asarray(variance, jnp.float32).reshape(-1)[:1] * 10.0
    )


if __name__ == "__main__":
    key = jax.random.PRNGKey(0)

    # Deterministic parameter init (module __init__ takes init_val).
    init_val = 0.3
    variance = jnp.asarray(init_val, dtype=jnp.float32)

    # Small example input; only its leading dimension matters.
    x = jax.random.normal(key, (8, 3), dtype=jnp.float32)

    out = jax.block_until_ready(single_variance_forward(x, variance))
    ref = single_variance_ref(x, variance)
    assert out.shape == (8, 1), out.shape
    assert out.dtype == jnp.float32, out.dtype
    assert jnp.allclose(out, ref, rtol=1e-6, atol=1e-6), (out, ref)

    # Extra shape coverage: lane-aligned (metadata reshape), multi-tile with a
    # partial last block, small non-aligned, and empty input.
    for n_extra in (1024, 1500, 300, 0):
        xe = jnp.zeros((n_extra, 3), jnp.float32)
        oe = jax.block_until_ready(single_variance_forward(xe, variance))
        re = single_variance_ref(xe, variance)
        assert oe.shape == (n_extra, 1), (n_extra, oe.shape)
        assert jnp.allclose(oe, re, rtol=1e-6, atol=1e-6), n_extra

    print("KERNEL_OK")
</pallas_src>

<mosaic_0001>
module attributes {stable_mosaic.version = 11 : i64} {
  func.func @_fill_kernel(%arg0: i32, %arg1: memref<1xf32, #tpu.memory_space<smem>>, %arg2: memref<1x128xf32, #tpu.memory_space<vmem>>) attributes {dimension_semantics = [#tpu.dimension_semantics<parallel>], iteration_bounds = array<i64: 1>, scalar_prefetch = 1 : i64, scratch_operands = 0 : i64, tpu.core_type = #tpu.core_type<tc>, window_params = [{transform_indices = @transform_0, window_bounds = array<i64: 1, 128>}]} {
    %c0 = arith.constant 0 : index
    %0 = memref.load %arg1[%c0] : memref<1xf32, #tpu.memory_space<smem>>
    %1 = vector.broadcast %0 : f32 to vector<1x128xf32>
    %c0_0 = arith.constant 0 : index
    %c0_1 = arith.constant 0 : index
    %2 = vector.load %arg2[%c0_0, %c0_1] : memref<1x128xf32, #tpu.memory_space<vmem>>, vector<1x128xf32>
    tpu.vector_store %arg2[%c0_0, %c0_1], %1 {strides = array<i32>} : memref<1x128xf32, #tpu.memory_space<vmem>>, vector<1x128xf32>,
    return
  }
  func.func @transform_0(%arg0: i32, %arg1: memref<1xf32, #tpu.memory_space<smem>>) -> (i32, i32) {
    %c0_i32 = arith.constant 0 : i32
    %c0_i32_0 = arith.constant 0 : i32
    return %arg0, %c0_i32 : i32, i32
  }
}

</mosaic_0001>

<llo_original>
// kernel: tpu_custom_call.1
$region0: #{tpu_custom_call.1}
  #allocation0 [shape = 'u32[]', space=smem, size = 0x4, offset = 0x4, fixed_abs, tag = 'smem constant byte address 0x4 - core index']
  #allocation1 [shape = 'u32[72,128]{1,0:T(1,128)}', space=vmem, size = 0x9000, scoped, tag = 'internal scratch']
  #allocation2 [shape = 's32[1]{0}', space=sflag, size = 0x4, scoped, tag = 'scoped memory for tpu_custom_call.1']
  #allocation3 [shape = 'f32[1]{0:T(128)S(6)}', space=smem, size = 0x200, scoped, tag = 'prefetched SMEM operand 0']
  %s0 = inlined_call_operand.<no memory space> [shape: f32[1], index: 0, kind: input, shape index: {}]
  %s1 = inlined_call_operand.hbm [shape: f32[1,128], index: 1, kind: output, shape index: {}]
  %s2 = sld [smem:[#allocation0]]
  $region10: #{tpu_custom_call.1} parent=0
    _
  %s4 = ssub.s32 1, %s2
  %s5 = scalar_select 0, %s4, %s2
  %6 = sst [smem:[#allocation3]] %s0
  $region1: #{tpu_custom_call.1} parent=0
    #allocation4 [shape = 'u8[512]{0}', space=vmem, size = 0x400, scoped, tag = 'output window, operand 0, single buffered']
    #allocation5 [shape = 's32[1]{0}', space=sflag, size = 0x4, scoped, tag = 'scoped memory for tpu_custom_call.1']
    %7 = vsyncpa [#allocation5], 0
    %s8 = sld [smem:[#allocation3]]
    %v9 = vstv %s8
    %10 = vst [vmem:[#allocation4] sm:$0x1] %v9
    // Predicated region
    $region2: #{tpu_custom_call.1} parent=1 // pred_check
      _
    $region3: #{tpu_custom_call.1} parent=1 // pred_check_branch
      %12 = sbr.rel (0) target = $region5
    $region4: #{tpu_custom_call.1} parent=1 // pred_region
      %14 = vsyncadd [#allocation5], 0
      %s16 = sshll.u32 [#allocation4], 4
      %s17 = int_to_ptr.vmem [resolvable:$true] %s16
      %s18 = sshll.u32 %s1, 4
      %s19 = int_to_ptr.hbm [resolvable:$true] %s18
      %21 = dma.vmem_to_hbm [thread:$0]  %s17, 16, %s19, [#allocation5]
    $region5: #{tpu_custom_call.1} parent=1 // pred_fallthru
      _
    // Predicated region
    $region6: #{tpu_custom_call.1} parent=1 // pred_check
      _
    $region7: #{tpu_custom_call.1} parent=1 // pred_check_branch
      %23 = sbr.rel (0) target = $region9
    $region8: #{tpu_custom_call.1} parent=1 // pred_region
      %25 = dma.done [#allocation5], 16
    $region9: #{tpu_custom_call.1} parent=1 // pred_fallthru
      _
    %26 = vsyncpa [#allocation5], 1

</llo_original>
